<compile_context>
chip_gen: v5e
topology: v5e:2x2
jax: 0.10.0
libtpu: 0.0.40
codegen_flags: <defaults>
</compile_context>

<pallas_src>
import functools

import jax
import jax.numpy as jnp
from jax.experimental import pallas as pl
from jax.experimental.pallas import tpu as pltpu

LANE = 128
SUBLANE = 8


def _round_up(n, m):
    return ((n + m - 1) // m) * m


def _cdiv(a, b):
    return -(-a // b)


def mlp_kernel(x_ref, w1_ref, b1_ref, w2_ref, b2_ref, o_ref, *, n_cls):
    # Layer 1: (tb, D) bf16 @ (D, H_pad) bf16 -> f32 acc on the MXU.
    h = jnp.dot(x_ref[...], w1_ref[...], preferred_element_type=jnp.float32)
    h = jnp.maximum(h + b1_ref[...], 0.0)            # f32 bias + ReLU (VPU, v5e-safe)
    # Layer 2: lane-dense (tb, H_pad) @ (H_pad, 128) -> f32 acc.
    out = jnp.dot(h.astype(w2_ref.dtype), w2_ref[...],
                  preferred_element_type=jnp.float32)
    out = out + b2_ref[...]
    # Compact store: only the real classes go back to HBM.  The masked vst
    # this implies is free here — vst slots are nowhere near saturated, and it
    # cuts output HBM traffic by 64x vs the padded 128-lane store.
    o_ref[...] = out[:, :n_cls].astype(o_ref.dtype)


def prepare_params(w1, b1, w2, b2, *, mxu_dtype=jnp.bfloat16):
    """Pad params lane-dense and cast MXU operands to bf16 — done ONCE.

    Padding rows/columns are exact zeros, so the padded math is bit-identical
    to the unpadded math.  Biases stay f32 (f32 epilogue).
      w1: (D_in, H)   b1: (H,)   w2: (H, C)   b2: (C,)
    """
    d_in, hidden = w1.shape
    n_cls = w2.shape[1]
    h_pad = _round_up(max(hidden, LANE), LANE)
    c_pad = _round_up(max(n_cls, LANE), LANE)
    w1p = jnp.zeros((d_in, h_pad), mxu_dtype).at[:, :hidden].set(
        w1.astype(mxu_dtype))
    b1p = jnp.zeros((1, h_pad), jnp.float32).at[:, :hidden].set(
        b1.reshape(1, -1).astype(jnp.float32))
    w2p = jnp.zeros((h_pad, c_pad), mxu_dtype).at[:hidden, :n_cls].set(
        w2.astype(mxu_dtype))
    b2p = jnp.zeros((1, c_pad), jnp.float32).at[:, :n_cls].set(
        b2.reshape(1, -1).astype(jnp.float32))
    return (w1p, b1p, w2p, b2p), n_cls


@functools.partial(jax.jit, static_argnames=("n_cls", "tile_b"))
def simple_classifier(x, params, n_cls=2, tile_b=512):
    """Fused Linear->ReLU->Linear forward.  x: (B, D_in) -> (B, n_cls)."""
    w1p, b1p, w2p, b2p = params
    batch, d_in = x.shape
    h_pad = w1p.shape[1]
    c_pad = w2p.shape[1]
    out_dtype = jnp.float32

    # Stream MXU operands in bf16 (halves the dominant HBM read of x).
    # TODO(synk): in a real pipeline the caller should supply bf16 activations
    # directly so this cast pass disappears entirely.
    xb = x.astype(w1p.dtype)

    # Batch tile: multiple of 8 sublanes.  The ragged last block is handled by
    # Pallas (OOB input rows are unspecified, OOB output rows masked on store),
    # so no wrapper-side zero-pad copy of x is needed.
    tb = min(tile_b, _round_up(batch, SUBLANE))
    if batch > SUBLANE and _cdiv(batch, tb) < 2:
        # Keep >= 2 grid steps so the "parallel" axis can shard across v7x's
        # two TensorCores; measured no-op on single-TC v5e/v6e.
        tb = _round_up(_cdiv(batch, 2), SUBLANE)
    grid = (_cdiv(batch, tb),)

    in_itemsize = jnp.dtype(xb.dtype).itemsize
    cost = pl.CostEstimate(
        flops=2 * batch * (d_in * h_pad + h_pad * c_pad),
        transcendentals=0,
        bytes_accessed=(batch * d_in * in_itemsize                 # x stream
                        + batch * n_cls * jnp.dtype(out_dtype).itemsize  # compact out
                        + (d_in * h_pad + h_pad * c_pad) * in_itemsize   # weights
                        + (h_pad + c_pad) * 4),                          # biases
    )

    kernel = functools.partial(mlp_kernel, n_cls=n_cls)
    return pl.pallas_call(
        kernel,
        out_shape=jax.ShapeDtypeStruct((batch, n_cls), out_dtype),
        grid=grid,
        in_specs=[
            # Streamed per batch tile (double-buffered by Pallas).
            # TODO(synk): if a profile shows exposed DMA on this stream, add
            # pipeline_mode=pl.Buffered(3) here and on out_specs.
            pl.BlockSpec((tb, d_in), lambda i: (i, 0)),
            # Tiny weights/biases: constant index_map -> VMEM-resident.
            pl.BlockSpec((d_in, h_pad), lambda i: (0, 0)),
            pl.BlockSpec((1, h_pad), lambda i: (0, 0)),
            pl.BlockSpec((h_pad, c_pad), lambda i: (0, 0)),
            pl.BlockSpec((1, c_pad), lambda i: (0, 0)),
        ],
        out_specs=pl.BlockSpec((tb, n_cls), lambda i: (i, 0)),
        compiler_params=pltpu.CompilerParams(
            dimension_semantics=("parallel",),
        ),
        cost_estimate=cost,
    )(xb, w1p, b1p, w2p, b2p)


def init_params(key, input_dim, hidden_dim=32, num_classes=2, dtype=jnp.float32):
    """Deterministic init mirroring nn.Linear's U(-1/sqrt(fan_in), 1/sqrt(fan_in))."""
    k1, k2, k3, k4 = jax.random.split(key, 4)
    bound1 = 1.0 / jnp.sqrt(input_dim)
    bound2 = 1.0 / jnp.sqrt(hidden_dim)
    w1 = jax.random.uniform(k1, (input_dim, hidden_dim), dtype, -bound1, bound1)
    b1 = jax.random.uniform(k2, (hidden_dim,), dtype, -bound1, bound1)
    w2 = jax.random.uniform(k3, (hidden_dim, num_classes), dtype, -bound2, bound2)
    b2 = jax.random.uniform(k4, (num_classes,), dtype, -bound2, bound2)
    return w1, b1, w2, b2


def _reference(x, w1, b1, w2, b2):
    """Numerics-matched reference: bf16 MXU operands, f32 accumulate/epilogue."""
    h = jnp.dot(x.astype(jnp.bfloat16), w1.astype(jnp.bfloat16),
                preferred_element_type=jnp.float32)
    h = jnp.maximum(h + b1.reshape(1, -1).astype(jnp.float32), 0.0)
    out = jnp.dot(h.astype(jnp.bfloat16), w2.astype(jnp.bfloat16),
                  preferred_element_type=jnp.float32)
    return out + b2.reshape(1, -1).astype(jnp.float32)


if __name__ == "__main__":
    key = jax.random.PRNGKey(0)
    kx, kp, kx2 = jax.random.split(key, 3)

    batch, input_dim, hidden_dim, num_classes = 8, 16, 32, 2
    x = jax.random.normal(kx, (batch, input_dim), jnp.float32)
    w1, b1, w2, b2 = init_params(kp, input_dim, hidden_dim, num_classes)

    # Pad / cast the parameters once (outside the forward path).
    params, n_cls = prepare_params(w1, b1, w2, b2)

    # Small-shape run (single grid step).
    out = jax.block_until_ready(simple_classifier(x, params, n_cls=n_cls))
    ref = _reference(x, w1, b1, w2, b2)
    assert out.shape == (batch, num_classes)
    assert jnp.allclose(out, ref, atol=1e-3, rtol=1e-3)

    # Exercise grid > 1 and the ragged last batch tile (no wrapper x pad copy).
    x_big = jax.random.normal(kx2, (300, input_dim), jnp.float32)
    out_big = jax.block_until_ready(
        simple_classifier(x_big, params, n_cls=n_cls, tile_b=128))
    ref_big = _reference(x_big, w1, b1, w2, b2)
    assert out_big.shape == (300, num_classes)
    assert jnp.allclose(out_big, ref_big, atol=1e-3, rtol=1e-3)

    print("KERNEL_OK")
</pallas_src>

<mosaic_0001>
module attributes {stable_mosaic.version = 11 : i64} {
  func.func @mlp_kernel(%arg0: i32, %arg1: memref<8x16xbf16, #tpu.memory_space<vmem>>, %arg2: memref<16x128xbf16, #tpu.memory_space<vmem>>, %arg3: memref<1x128xf32, #tpu.memory_space<vmem>>, %arg4: memref<128x128xbf16, #tpu.memory_space<vmem>>, %arg5: memref<1x128xf32, #tpu.memory_space<vmem>>, %arg6: memref<8x2xf32, #tpu.memory_space<vmem>>) attributes {dimension_semantics = [#tpu.dimension_semantics<parallel>], iteration_bounds = array<i64: 1>, scalar_prefetch = 0 : i64, scratch_operands = 0 : i64, tpu.core_type = #tpu.core_type<tc>, window_params = [{transform_indices = @transform_0, window_bounds = array<i64: 8, 16>}, {pipeline_mode = #tpu.pipeline_mode<synchronous>, transform_indices = @transform_1, window_bounds = array<i64: 16, 128>}, {pipeline_mode = #tpu.pipeline_mode<synchronous>, transform_indices = @transform_2, window_bounds = array<i64: 1, 128>}, {pipeline_mode = #tpu.pipeline_mode<synchronous>, transform_indices = @transform_3, window_bounds = array<i64: 128, 128>}, {pipeline_mode = #tpu.pipeline_mode<synchronous>, transform_indices = @transform_4, window_bounds = array<i64: 1, 128>}, {transform_indices = @transform_5, window_bounds = array<i64: 8, 2>}]} {
    %c0 = arith.constant 0 : index
    %c0_0 = arith.constant 0 : index
    %0 = vector.load %arg1[%c0, %c0_0] : memref<8x16xbf16, #tpu.memory_space<vmem>>, vector<8x16xbf16>
    %c0_1 = arith.constant 0 : index
    %c0_2 = arith.constant 0 : index
    %1 = vector.load %arg2[%c0_1, %c0_2] : memref<16x128xbf16, #tpu.memory_space<vmem>>, vector<16x128xbf16>
    %cst = arith.constant dense<0.000000e+00> : vector<8x128xf32>
    %2 = tpu.matmul %0, %1, %cst {dimension_numbers = #tpu.dot_dimension_numbers<[1], [0], [0], [1], [0, 0, 1, 1], [], []>} : vector<8x16xbf16>, vector<16x128xbf16>, vector<8x128xf32> -> vector<8x128xf32>
    %c0_3 = arith.constant 0 : index
    %c0_4 = arith.constant 0 : index
    %3 = vector.load %arg3[%c0_3, %c0_4] : memref<1x128xf32, #tpu.memory_space<vmem>>, vector<1x128xf32>
    %4 = vector.broadcast %3 : vector<1x128xf32> to vector<8x128xf32>
    %5 = arith.addf %2, %4 : vector<8x128xf32>
    %cst_5 = arith.constant 0.000000e+00 : f32
    %6 = vector.broadcast %cst_5 : f32 to vector<8x128xf32>
    %7 = arith.maximumf %5, %6 : vector<8x128xf32>
    %8 = arith.truncf %7 : vector<8x128xf32> to vector<8x128xbf16>
    %c0_6 = arith.constant 0 : index
    %c0_7 = arith.constant 0 : index
    %9 = vector.load %arg4[%c0_6, %c0_7] : memref<128x128xbf16, #tpu.memory_space<vmem>>, vector<128x128xbf16>
    %cst_8 = arith.constant dense<0.000000e+00> : vector<8x128xf32>
    %10 = tpu.matmul %8, %9, %cst_8 {dimension_numbers = #tpu.dot_dimension_numbers<[1], [0], [0], [1], [0, 0, 1, 1], [], []>} : vector<8x128xbf16>, vector<128x128xbf16>, vector<8x128xf32> -> vector<8x128xf32>
    %c0_9 = arith.constant 0 : index
    %c0_10 = arith.constant 0 : index
    %11 = vector.load %arg5[%c0_9, %c0_10] : memref<1x128xf32, #tpu.memory_space<vmem>>, vector<1x128xf32>
    %12 = vector.broadcast %11 : vector<1x128xf32> to vector<8x128xf32>
    %13 = arith.addf %10, %12 : vector<8x128xf32>
    %14 = vector.extract_strided_slice %13 {offsets = [0, 0], sizes = [8, 2], strides = [1, 1]} : vector<8x128xf32> to vector<8x2xf32>
    %c0_11 = arith.constant 0 : index
    %c0_12 = arith.constant 0 : index
    %15 = vector.load %arg6[%c0_11, %c0_12] : memref<8x2xf32, #tpu.memory_space<vmem>>, vector<8x2xf32>
    tpu.vector_store %arg6[%c0_11, %c0_12], %14 {strides = array<i32>} : memref<8x2xf32, #tpu.memory_space<vmem>>, vector<8x2xf32>,
    return
  }
  func.func @transform_0(%arg0: i32) -> (i32, i32) {
    %c0_i32 = arith.constant 0 : i32
    %c0_i32_0 = arith.constant 0 : i32
    return %arg0, %c0_i32 : i32, i32
  }
  func.func @transform_1(%arg0: i32) -> (i32, i32) {
    %c0_i32 = arith.constant 0 : i32
    %c0_i32_0 = arith.constant 0 : i32
    %c0_i32_1 = arith.constant 0 : i32
    return %c0_i32, %c0_i32_0 : i32, i32
  }
  func.func @transform_2(%arg0: i32) -> (i32, i32) {
    %c0_i32 = arith.constant 0 : i32
    %c0_i32_0 = arith.constant 0 : i32
    %c0_i32_1 = arith.constant 0 : i32
    return %c0_i32, %c0_i32_0 : i32, i32
  }
  func.func @transform_3(%arg0: i32) -> (i32, i32) {
    %c0_i32 = arith.constant 0 : i32
    %c0_i32_0 = arith.constant 0 : i32
    %c0_i32_1 = arith.constant 0 : i32
    return %c0_i32, %c0_i32_0 : i32, i32
  }
  func.func @transform_4(%arg0: i32) -> (i32, i32) {
    %c0_i32 = arith.constant 0 : i32
    %c0_i32_0 = arith.constant 0 : i32
    %c0_i32_1 = arith.constant 0 : i32
    return %c0_i32, %c0_i32_0 : i32, i32
  }
  func.func @transform_5(%arg0: i32) -> (i32, i32) {
    %c0_i32 = arith.constant 0 : i32
    %c0_i32_0 = arith.constant 0 : i32
    return %arg0, %c0_i32 : i32, i32
  }
}

</mosaic_0001>

<llo_original>
// kernel: simple_classifier.1
$region0: #{simple_classifier.1}
  #allocation0 [shape = 'u32[]', space=smem, size = 0x4, offset = 0x4, fixed_abs, tag = 'smem constant byte address 0x4 - core index']
  #allocation1 [shape = 'u32[72,128]{1,0:T(1,128)}', space=vmem, size = 0x9000, scoped, tag = 'internal scratch']
  %s0 = inlined_call_operand.vmem [shape: bf16[8,16], index: 0, kind: input, shape index: {}]
  %s1 = inlined_call_operand.vmem [shape: bf16[16,128], index: 1, kind: input, shape index: {}]
  %s2 = inlined_call_operand.vmem [shape: f32[1,128], index: 2, kind: input, shape index: {}]
  %s3 = inlined_call_operand.hbm [shape: bf16[128,128], index: 3, kind: input, shape index: {}]
  %s4 = inlined_call_operand.vmem [shape: f32[1,128], index: 4, kind: input, shape index: {}]
  %s5 = inlined_call_operand.vmem [shape: f32[8,2], index: 5, kind: output, shape index: {}]
  %s6 = sld [smem:[#allocation0]]
  $region34: #{simple_classifier.1} parent=0
    _
  %s8 = ssub.s32 1, %s6
  %s9 = scalar_select 0, %s8, %s6
  $region1: #{simple_classifier.1} parent=0
    #allocation2 [shape = 'u8[32768]{0}', space=vmem, size = 0x8000, scoped, tag = 'input window, operand 3, single buffered']
    #allocation3 [shape = 's32[1]{0}', space=sflag, size = 0x4, scoped, tag = 'scoped memory for simple_classifier.1']
    %10 = vsyncpa [#allocation3], 0
    // Predicated region
    $region2: #{simple_classifier.1} parent=1 // pred_check
      _
    $region3: #{simple_classifier.1} parent=1 // pred_check_branch
      %12 = sbr.rel (0) target = $region5
    $region4: #{simple_classifier.1} parent=1 // pred_region
      _
    $region5: #{simple_classifier.1} parent=1 // pred_fallthru
      _
    // Predicated region
    $region6: #{simple_classifier.1} parent=1 // pred_check
      _
    $region7: #{simple_classifier.1} parent=1 // pred_check_branch
      %14 = sbr.rel (0) target = $region9
    $region8: #{simple_classifier.1} parent=1 // pred_region
      _
    $region9: #{simple_classifier.1} parent=1 // pred_fallthru
      _
    // Predicated region
    $region10: #{simple_classifier.1} parent=1 // pred_check
      _
    $region11: #{simple_classifier.1} parent=1 // pred_check_branch
      %16 = sbr.rel (0) target = $region13
    $region12: #{simple_classifier.1} parent=1 // pred_region
      _
    $region13: #{simple_classifier.1} parent=1 // pred_fallthru
      _
    // Predicated region
    $region14: #{simple_classifier.1} parent=1 // pred_check
      _
    $region15: #{simple_classifier.1} parent=1 // pred_check_branch
      %18 = sbr.rel (0) target = $region17
    $region16: #{simple_classifier.1} parent=1 // pred_region
      %20 = vsyncadd [#allocation3], 0
      %s21 = sshll.u32 %s3, 4
      %s22 = int_to_ptr.hbm [resolvable:$true] %s21
      %s23 = sshll.u32 [#allocation2], 4
      %s24 = int_to_ptr.vmem [resolvable:$true] %s23
      %29 = dma.hbm_to_vmem [thread:$0]  %s22, 1024, %s24, [#allocation3], 64, 64, 4
    $region17: #{simple_classifier.1} parent=1 // pred_fallthru
      _
    // Predicated region
    $region18: #{simple_classifier.1} parent=1 // pred_check
      _
    $region19: #{simple_classifier.1} parent=1 // pred_check_branch
      %31 = sbr.rel (0) target = $region21
    $region20: #{simple_classifier.1} parent=1 // pred_region
      _
    $region21: #{simple_classifier.1} parent=1 // pred_fallthru
      _
    // Predicated region
    $region22: #{simple_classifier.1} parent=1 // pred_check
      _
    $region23: #{simple_classifier.1} parent=1 // pred_check_branch
      %33 = sbr.rel (0) target = $region25
    $region24: #{simple_classifier.1} parent=1 // pred_region
      %35 = dma.done [#allocation3], 1024
    $region25: #{simple_classifier.1} parent=1 // pred_fallthru
      _
    %v37 = vld [vmem:[%s0] sm:$0xf]
    %v38 = vld [vmem:[%s1] sm:$0xf]
    %v39 = vld [vmem:[%s1 + $0x4] sm:$0xf]
    %v40 = vld [vmem:[%s2] sm:$0x1]
    %v42 = vperm.slane %v40, 0
    %v46 = vunpack.c.l.b16 %v38
    %v47 = vunpack.c.l.b16 %v39
    %v48 = vpack.c.b16 %v47, %v46
    %vm50 = vcmask 130048
    %v52 = vsel %vm50, %v37, 0
    %54 = vmatpush.bf16.msra.mxu0 0
    %55 = vmatpush.bf16.msra.mxu0 0
    %56 = vmatpush.bf16.msra.mxu0 0
    %57 = vmatpush.bf16.msra.mxu0 0
    %58 = vmatpush.bf16.msra.mxu0 0
    %59 = vmatpush.bf16.msra.mxu0 0
    %60 = vmatpush.bf16.msra.mxu0 0
    %61 = vmatpush.bf16.msra.mxu0 %v48
    %62 = vmatmul.bf16.gmra.mxu0 %v52
    %v63 = vpop.f32.mrf.mxu0
    %v64 = vadd.f32 %v42, %v63
    %v65 = vpop.f32.mrf.mxu0
    %66 = vdwg.mxu0
    %v67 = vmax.f32 %v64, 0.0
    %v68 = vpack.c.bf16 %v67, %v67
    %v69 = vld [vmem:[#allocation2] sm:$0xf]
    %v70 = vld [vmem:[#allocation2 + $0x4] sm:$0xf]
    %v71 = vld [vmem:[#allocation2 + $0x8] sm:$0xf]
    %v72 = vld [vmem:[#allocation2 + $0xc] sm:$0xf]
    %v73 = vld [vmem:[#allocation2 + $0x10] sm:$0xf]
    %v74 = vld [vmem:[#allocation2 + $0x14] sm:$0xf]
    %v75 = vld [vmem:[#allocation2 + $0x18] sm:$0xf]
    %v76 = vld [vmem:[#allocation2 + $0x1c] sm:$0xf]
    %v77 = vld [vmem:[#allocation2 + $0x20] sm:$0xf]
    %v78 = vld [vmem:[#allocation2 + $0x24] sm:$0xf]
    %v79 = vld [vmem:[#allocation2 + $0x28] sm:$0xf]
    %v80 = vld [vmem:[#allocation2 + $0x2c] sm:$0xf]
    %v81 = vld [vmem:[#allocation2 + $0x30] sm:$0xf]
    %v82 = vld [vmem:[#allocation2 + $0x34] sm:$0xf]
    %v83 = vld [vmem:[#allocation2 + $0x38] sm:$0xf]
    %v84 = vld [vmem:[#allocation2 + $0x3c] sm:$0xf]
    %v85 = vld [vmem:[%s4] sm:$0x1]
    %v87 = vperm.slane %v85, 0
    %v105 = vunpack.c.l.b16 %v69
    %v106 = vunpack.c.l.b16 %v70
    %v107 = vunpack.c.l.b16 %v71
    %v108 = vunpack.c.l.b16 %v72
    %v109 = vunpack.c.l.b16 %v73
    %v110 = vunpack.c.l.b16 %v74
    %v111 = vunpack.c.l.b16 %v75
    %v112 = vunpack.c.l.b16 %v76
    %v113 = vunpack.c.l.b16 %v77
    %v114 = vunpack.c.l.b16 %v78
    %v115 = vunpack.c.l.b16 %v79
    %v116 = vunpack.c.l.b16 %v80
    %v117 = vunpack.c.l.b16 %v81
    %v118 = vunpack.c.l.b16 %v82
    %v119 = vunpack.c.l.b16 %v83
    %v120 = vunpack.c.l.b16 %v84
    %v121 = vpack.c.b16 %v106, %v105
    %v122 = vpack.c.b16 %v108, %v107
    %v123 = vpack.c.b16 %v110, %v109
    %v124 = vpack.c.b16 %v112, %v111
    %v125 = vpack.c.b16 %v114, %v113
    %v126 = vpack.c.b16 %v116, %v115
    %v127 = vpack.c.b16 %v118, %v117
    %v128 = vpack.c.b16 %v120, %v119
    %137 = vmatpush.bf16.msra.mxu0 %v128
    %138 = vmatpush.bf16.msra.mxu0 %v127
    %139 = vmatpush.bf16.msra.mxu0 %v126
    %140 = vmatpush.bf16.msra.mxu0 %v125
    %141 = vmatpush.bf16.msra.mxu0 %v124
    %142 = vmatpush.bf16.msra.mxu0 %v123
    %143 = vmatpush.bf16.msra.mxu0 %v122
    %144 = vmatpush.bf16.msra.mxu0 %v121
    %145 = vmatmul.bf16.gmra.mxu0 %v68
    %v146 = vpop.f32.mrf.mxu0
    %v147 = vadd.f32 %v87, %v146
    %v148 = vpop.f32.mrf.mxu0
    %149 = vdwg.mxu0
    %vm150 = vcmask 15360
    %151 = vst.msk [vmem:[%s5] sm:$0xff] %vm150, %v147
    // Predicated region
    $region26: #{simple_classifier.1} parent=1 // pred_check
      _
    $region27: #{simple_classifier.1} parent=1 // pred_check_branch
      %153 = sbr.rel (0) target = $region29
    $region28: #{simple_classifier.1} parent=1 // pred_region
      _
    $region29: #{simple_classifier.1} parent=1 // pred_fallthru
      _
    // Predicated region
    $region30: #{simple_classifier.1} parent=1 // pred_check
      _
    $region31: #{simple_classifier.1} parent=1 // pred_check_branch
      %155 = sbr.rel (0) target = $region33
    $region32: #{simple_classifier.1} parent=1 // pred_region
      _
    $region33: #{simple_classifier.1} parent=1 // pred_fallthru
      _
    %156 = vsyncpa [#allocation3], 1

</llo_original>
